<compile_context>
chip_gen: v7x
topology: tpu7x:2x2x1
jax: 0.10.0
libtpu: 0.0.40
codegen_flags: <defaults>
</compile_context>

<pallas_src>
import numpy as np
import jax
import jax.numpy as jnp
from jax import lax
from jax.experimental import pallas as pl
from jax.experimental.pallas import tpu as pltpu

KS = (2, 3, 4)                  # Conv1d kernel sizes
KMAX = max(KS)                  # 4
N_CONV_CH = 2                   # out_channels per conv
N_POOL = N_CONV_CH * len(KS)    # 6 pooled features fed to the FC layer
LANES = 128                     # lane width for the padded (lane-dense) output
NEG_BIG = -1e30                 # finite "-inf" (keeps every path NaN-free)


def _round_up(x, m):
    return ((x + m - 1) // m) * m


# ----------------------------- Pallas kernel --------------------------------
def _make_kernel(bt, L, V):
    """bt: batch rows handled per grid step."""

    def kernel(tok_ref,            # (B*L,) int32 in SMEM (scalar prefetch)
               tbl_ref,            # (V, E) f32, VMEM resident
               w_ref,              # (KMAX, E, N_POOL) bf16 per-tap conv weights
               mask_ref,           # (L, N_POOL) f32 additive time-validity mask
               bconv_ref,          # (1, N_POOL) f32 conv biases
               fcw_ref,            # (N_POOL, out_pad) f32 (zero-padded columns)
               fcb_ref,            # (1, out_pad) f32 (NEG_BIG in padded columns)
               out_ref,            # (bt, out_pad) f32
               emb_ref):           # (n_rows, E) f32 scratch: gathered embeddings
        # ---- embedding gather: SMEM token ids -> dynamic row loads of the
        # ---- VMEM-resident table (no one-hot / V-wide matmul).
        emb_ref[...] = jnp.zeros_like(emb_ref)        # zero the tail pad rows
        tok_base = pl.program_id(0) * (bt * L)

        def gather(j, carry):
            tok = jnp.clip(tok_ref[tok_base + j], 0, V - 1)   # guard OOB ids
            emb_ref[pl.ds(j, 1), :] = tbl_ref[pl.ds(tok, 1), :]
            return carry

        lax.fori_loop(0, bt * L, gather, 0)
        emb = emb_ref[...]                            # (n_rows, E) f32

        # ---- all three convs as KMAX shifted matmuls accumulated in f32
        # (bf16 MXU inputs, f32 accumulation; no lane-axis im2col concat).
        # Rows that slide past a sequence end only feed positions that the
        # validity mask removes before the max-pool.
        acts = jnp.zeros((bt * L, N_POOL), jnp.float32)
        for k in range(KMAX):
            lhs = emb[k:k + bt * L, :].astype(jnp.bfloat16)     # (bt*L, E)
            acts = acts + jnp.dot(lhs, w_ref[k],
                                  preferred_element_type=jnp.float32)

        # ---- precomputed validity mask, global max-pool, bias after the max.
        acts = acts.reshape(bt, L, N_POOL) + mask_ref[...]
        pooled = jnp.max(acts, axis=1) + bconv_ref[...]         # (bt, N_POOL)

        # ---- FC (lane-padded to out_pad) + softmax, all in f32.
        logits = jnp.dot(pooled, fcw_ref[...],
                         preferred_element_type=jnp.float32) + fcb_ref[...]
        m = jnp.max(logits, axis=1, keepdims=True)
        e = jnp.exp(logits - m)                       # padded columns -> exactly 0
        denom = jnp.sum(e, axis=1, keepdims=True)
        out_ref[...] = (e * pl.reciprocal(denom, approx=True)).astype(out_ref.dtype)

    return kernel


# ------------------------------ param packing --------------------------------
def _pack_params(params, out_pad):
    """Per-tap conv weights (KMAX, E, 6), conv bias (1, 6), padded FC weight/bias."""
    E = params["embedding"].shape[1]
    out_dim = params["fc_b"].shape[0]

    w_taps = np.zeros((KMAX, E, N_POOL), np.float32)
    b_conv = np.zeros((1, N_POOL), np.float32)
    col = 0
    for ks in KS:
        w = np.asarray(params[f"conv{ks}_w"], np.float32)     # (2, E, ks)
        b = np.asarray(params[f"conv{ks}_b"], np.float32)     # (2,)
        for o in range(N_CONV_CH):
            w_taps[:ks, :, col] = w[o].T                      # (ks, E); taps >= ks stay 0
            b_conv[0, col] = b[o]
            col += 1

    fcw = np.zeros((N_POOL, out_pad), np.float32)
    fcw[:, :out_dim] = np.asarray(params["fc_w"], np.float32).T
    fcb = np.full((1, out_pad), NEG_BIG, np.float32)          # padded cols -> -1e30
    fcb[0, :out_dim] = np.asarray(params["fc_b"], np.float32)

    return (jnp.asarray(w_taps, jnp.bfloat16), jnp.asarray(b_conv),
            jnp.asarray(fcw), jnp.asarray(fcb))


def _time_mask(L):
    """(L, 6) additive mask: 0 where the window is valid for that column's conv."""
    mask = np.zeros((L, N_POOL), np.float32)
    for c in range(N_POOL):
        ks = KS[c // N_CONV_CH]
        mask[L - ks + 1:, c] = NEG_BIG
    return jnp.asarray(mask)


# ------------------------------ wrapper --------------------------------------
def textcnn_forward(tokens, params, *, batch_tile=None):
    """tokens: (B, L) int32; returns (B, output_dim) float32 softmax probs."""
    B, L = tokens.shape
    V, E = params["embedding"].shape
    out_dim = params["fc_b"].shape[0]
    assert L >= KMAX, "sequence must be at least as long as the widest conv kernel"

    # TODO(synk): at large B pick batch_tile as a multiple of 8 sized for VMEM;
    # the toy batch (2 rows) fits in a single grid step.
    bt = B if batch_tile is None else batch_tile
    assert B % bt == 0
    out_pad = _round_up(max(out_dim, LANES), LANES)   # lane-dense output slab
    n_rows = _round_up(bt * L + KMAX - 1, 8)          # gather scratch rows

    tbl = params["embedding"].astype(jnp.float32)
    w_taps, b_conv, fcw, fcb = _pack_params(params, out_pad)
    mask = _time_mask(L)
    tok_flat = tokens.reshape(B * L).astype(jnp.int32)

    grid_spec = pltpu.PrefetchScalarGridSpec(
        num_scalar_prefetch=1,
        grid=(B // bt,),
        in_specs=[
            pl.BlockSpec((V, E), lambda i, tok: (0, 0)),               # table, resident
            pl.BlockSpec((KMAX, E, N_POOL), lambda i, tok: (0, 0, 0)), # conv taps
            pl.BlockSpec((L, N_POOL), lambda i, tok: (0, 0)),          # time mask
            pl.BlockSpec((1, N_POOL), lambda i, tok: (0, 0)),          # conv bias
            pl.BlockSpec((N_POOL, out_pad), lambda i, tok: (0, 0)),    # FC weight
            pl.BlockSpec((1, out_pad), lambda i, tok: (0, 0)),         # FC bias
        ],
        out_specs=pl.BlockSpec((bt, out_pad), lambda i, tok: (i, 0)),
        scratch_shapes=[pltpu.VMEM((n_rows, E), jnp.float32)],
    )

    out_padded = pl.pallas_call(
        _make_kernel(bt, L, V),
        out_shape=jax.ShapeDtypeStruct((B, out_pad), jnp.float32),
        grid_spec=grid_spec,
        compiler_params=pltpu.CompilerParams(
            dimension_semantics=("parallel",)),       # batch tiles shard across TCs
    )(tok_flat, tbl, w_taps, mask, b_conv, fcw, fcb)

    return out_padded[:, :out_dim]


# --------------------------- pure-JAX reference ------------------------------
def textcnn_reference(tokens, params):
    emb = params["embedding"][tokens].astype(jnp.float32)     # (B, L, E)
    pools = []
    for ks in KS:
        w = params[f"conv{ks}_w"]          # (2, E, ks)
        b = params[f"conv{ks}_b"]          # (2,)
        L = emb.shape[1]
        L_out = L - ks + 1
        c = jnp.stack([emb[:, k:k + L_out, :] @ w[:, :, k].T for k in range(ks)],
                      axis=0).sum(0) + b   # (B, L_out, 2)
        pools.append(jnp.max(c, axis=1))   # (B, 2)
    pooled = jnp.concatenate(pools, axis=1)                   # (B, 6)
    logits = pooled @ params["fc_w"].T + params["fc_b"]
    return jax.nn.softmax(logits, axis=1)


# --------------------------------- main ---------------------------------------
if __name__ == "__main__":
    B = 2
    max_sequence_length = 16
    max_token_num = 100
    embedding_dim = 32
    output_dim = 4

    key = jax.random.PRNGKey(0)
    keys = jax.random.split(key, 10)

    params = {
        "embedding": jax.random.normal(keys[0], (max_token_num, embedding_dim),
                                       jnp.float32),
        "conv2_w": 0.1 * jax.random.normal(keys[1], (2, embedding_dim, 2), jnp.float32),
        "conv2_b": 0.1 * jax.random.normal(keys[2], (2,), jnp.float32),
        "conv3_w": 0.1 * jax.random.normal(keys[3], (2, embedding_dim, 3), jnp.float32),
        "conv3_b": 0.1 * jax.random.normal(keys[4], (2,), jnp.float32),
        "conv4_w": 0.1 * jax.random.normal(keys[5], (2, embedding_dim, 4), jnp.float32),
        "conv4_b": 0.1 * jax.random.normal(keys[6], (2,), jnp.float32),
        "fc_w": 0.1 * jax.random.normal(keys[7], (output_dim, 2 * 3), jnp.float32),
        "fc_b": 0.1 * jax.random.normal(keys[8], (output_dim,), jnp.float32),
    }

    tokens = jax.random.randint(keys[9], (B, max_sequence_length), 0,
                                max_token_num, dtype=jnp.int32)

    out = jax.block_until_ready(textcnn_forward(tokens, params))
    ref = jax.block_until_ready(textcnn_reference(tokens, params))

    assert out.shape == (B, output_dim)
    # bf16 MXU inputs (f32 accumulation) + approx reciprocal => looser tolerance
    # than the all-f32 variant; 5e-3 on softmax probabilities is comfortable.
    assert np.allclose(np.asarray(out), np.asarray(ref), atol=5e-3, rtol=5e-3), (
        float(np.max(np.abs(np.asarray(out) - np.asarray(ref)))))

    print("KERNEL_OK")
</pallas_src>

<mosaic_0001>
module attributes {stable_mosaic.version = 11 : i64} {
  func.func @kernel(%arg0: i32, %arg1: memref<32xi32, #tpu.memory_space<smem>>, %arg2: memref<100x32xf32, #tpu.memory_space<vmem>>, %arg3: memref<4x32x6xbf16, #tpu.memory_space<vmem>>, %arg4: memref<16x6xf32, #tpu.memory_space<vmem>>, %arg5: memref<1x6xf32, #tpu.memory_space<vmem>>, %arg6: memref<6x128xf32, #tpu.memory_space<vmem>>, %arg7: memref<1x128xf32, #tpu.memory_space<vmem>>, %arg8: memref<2x128xf32, #tpu.memory_space<vmem>>, %arg9: memref<40x32xf32, #tpu.memory_space<vmem>>) attributes {dimension_semantics = [#tpu.dimension_semantics<parallel>], iteration_bounds = array<i64: 1>, scalar_prefetch = 1 : i64, scratch_operands = 1 : i64, tpu.core_type = #tpu.core_type<tc>, window_params = [{pipeline_mode = #tpu.pipeline_mode<synchronous>, transform_indices = @transform_0, window_bounds = array<i64: 100, 32>}, {pipeline_mode = #tpu.pipeline_mode<synchronous>, transform_indices = @transform_1, window_bounds = array<i64: 4, 32, 6>}, {pipeline_mode = #tpu.pipeline_mode<synchronous>, transform_indices = @transform_2, window_bounds = array<i64: 16, 6>}, {pipeline_mode = #tpu.pipeline_mode<synchronous>, transform_indices = @transform_3, window_bounds = array<i64: 1, 6>}, {pipeline_mode = #tpu.pipeline_mode<synchronous>, transform_indices = @transform_4, window_bounds = array<i64: 6, 128>}, {pipeline_mode = #tpu.pipeline_mode<synchronous>, transform_indices = @transform_5, window_bounds = array<i64: 1, 128>}, {transform_indices = @transform_6, window_bounds = array<i64: 2, 128>}]} {
    %cst = arith.constant 0.000000e+00 : f32
    %0 = vector.broadcast %cst : f32 to vector<40x32xf32>
    %c0 = arith.constant 0 : index
    %c0_0 = arith.constant 0 : index
    %1 = vector.load %arg9[%c0, %c0_0] : memref<40x32xf32, #tpu.memory_space<vmem>>, vector<40x32xf32>
    tpu.vector_store %arg9[%c0, %c0_0], %0 {strides = array<i32>} : memref<40x32xf32, #tpu.memory_space<vmem>>, vector<40x32xf32>,
    %c32_i32 = arith.constant 32 : i32
    %2 = arith.muli %arg0, %c32_i32 : i32
    %c0_i32 = arith.constant 0 : i32
    %c32_i32_1 = arith.constant 32 : i32
    %3 = arith.addi %c0_i32, %c32_i32_1 : i32
    %c1_i32 = arith.constant 1 : i32
    scf.for %arg10 = %c0_i32 to %3 step %c1_i32  : i32 {
      %55 = arith.addi %2, %arg10 : i32
      %56 = arith.index_cast %55 : i32 to index
      %57 = memref.load %arg1[%56] : memref<32xi32, #tpu.memory_space<smem>>
      %c0_i32_33 = arith.constant 0 : i32
      %c99_i32 = arith.constant 99 : i32
      %58 = arith.maxsi %c0_i32_33, %57 : i32
      %59 = arith.minsi %c99_i32, %58 : i32
      %60 = arith.index_cast %59 : i32 to index
      %c0_34 = arith.constant 0 : index
      %61 = vector.load %arg2[%60, %c0_34] : memref<100x32xf32, #tpu.memory_space<vmem>>, vector<1x32xf32>
      %62 = arith.index_cast %arg10 : i32 to index
      %c0_35 = arith.constant 0 : index
      %63 = vector.load %arg9[%62, %c0_35] : memref<40x32xf32, #tpu.memory_space<vmem>>, vector<1x32xf32>
      tpu.vector_store %arg9[%62, %c0_35], %61 {strides = array<i32>} : memref<40x32xf32, #tpu.memory_space<vmem>>, vector<1x32xf32>,
    }
    %c32_i32_2 = arith.constant 32 : i32
    %c0_3 = arith.constant 0 : index
    %c0_4 = arith.constant 0 : index
    %4 = vector.load %arg9[%c0_3, %c0_4] : memref<40x32xf32, #tpu.memory_space<vmem>>, vector<40x32xf32>
    %cst_5 = arith.constant 0.000000e+00 : f32
    %5 = vector.broadcast %cst_5 : f32 to vector<32x6xf32>
    %6 = vector.extract_strided_slice %4 {offsets = [0, 0], sizes = [32, 32], strides = [1, 1]} : vector<40x32xf32> to vector<32x32xf32>
    %7 = arith.truncf %6 : vector<32x32xf32> to vector<32x32xbf16>
    %c0_6 = arith.constant 0 : index
    %c0_7 = arith.constant 0 : index
    %c0_8 = arith.constant 0 : index
    %8 = vector.load %arg3[%c0_6, %c0_7, %c0_8] : memref<4x32x6xbf16, #tpu.memory_space<vmem>>, vector<1x32x6xbf16>
    %9 = vector.shape_cast %8 : vector<1x32x6xbf16> to vector<32x6xbf16>
    %cst_9 = arith.constant dense<0.000000e+00> : vector<32x6xf32>
    %10 = tpu.matmul %7, %9, %cst_9 {dimension_numbers = #tpu.dot_dimension_numbers<[1], [0], [0], [1], [0, 0, 1, 1], [], []>} : vector<32x32xbf16>, vector<32x6xbf16>, vector<32x6xf32> -> vector<32x6xf32>
    %11 = arith.addf %5, %10 : vector<32x6xf32>
    %12 = vector.extract_strided_slice %4 {offsets = [1, 0], sizes = [32, 32], strides = [1, 1]} : vector<40x32xf32> to vector<32x32xf32>
    %13 = arith.truncf %12 : vector<32x32xf32> to vector<32x32xbf16>
    %c1 = arith.constant 1 : index
    %c0_10 = arith.constant 0 : index
    %c0_11 = arith.constant 0 : index
    %14 = vector.load %arg3[%c1, %c0_10, %c0_11] : memref<4x32x6xbf16, #tpu.memory_space<vmem>>, vector<1x32x6xbf16>
    %15 = vector.shape_cast %14 : vector<1x32x6xbf16> to vector<32x6xbf16>
    %cst_12 = arith.constant dense<0.000000e+00> : vector<32x6xf32>
    %16 = tpu.matmul %13, %15, %cst_12 {dimension_numbers = #tpu.dot_dimension_numbers<[1], [0], [0], [1], [0, 0, 1, 1], [], []>} : vector<32x32xbf16>, vector<32x6xbf16>, vector<32x6xf32> -> vector<32x6xf32>
    %17 = arith.addf %11, %16 : vector<32x6xf32>
    %18 = vector.extract_strided_slice %4 {offsets = [2, 0], sizes = [32, 32], strides = [1, 1]} : vector<40x32xf32> to vector<32x32xf32>
    %19 = arith.truncf %18 : vector<32x32xf32> to vector<32x32xbf16>
    %c2 = arith.constant 2 : index
    %c0_13 = arith.constant 0 : index
    %c0_14 = arith.constant 0 : index
    %20 = vector.load %arg3[%c2, %c0_13, %c0_14] : memref<4x32x6xbf16, #tpu.memory_space<vmem>>, vector<1x32x6xbf16>
    %21 = vector.shape_cast %20 : vector<1x32x6xbf16> to vector<32x6xbf16>
    %cst_15 = arith.constant dense<0.000000e+00> : vector<32x6xf32>
    %22 = tpu.matmul %19, %21, %cst_15 {dimension_numbers = #tpu.dot_dimension_numbers<[1], [0], [0], [1], [0, 0, 1, 1], [], []>} : vector<32x32xbf16>, vector<32x6xbf16>, vector<32x6xf32> -> vector<32x6xf32>
    %23 = arith.addf %17, %22 : vector<32x6xf32>
    %24 = vector.extract_strided_slice %4 {offsets = [3, 0], sizes = [32, 32], strides = [1, 1]} : vector<40x32xf32> to vector<32x32xf32>
    %25 = arith.truncf %24 : vector<32x32xf32> to vector<32x32xbf16>
    %c3 = arith.constant 3 : index
    %c0_16 = arith.constant 0 : index
    %c0_17 = arith.constant 0 : index
    %26 = vector.load %arg3[%c3, %c0_16, %c0_17] : memref<4x32x6xbf16, #tpu.memory_space<vmem>>, vector<1x32x6xbf16>
    %27 = vector.shape_cast %26 : vector<1x32x6xbf16> to vector<32x6xbf16>
    %cst_18 = arith.constant dense<0.000000e+00> : vector<32x6xf32>
    %28 = tpu.matmul %25, %27, %cst_18 {dimension_numbers = #tpu.dot_dimension_numbers<[1], [0], [0], [1], [0, 0, 1, 1], [], []>} : vector<32x32xbf16>, vector<32x6xbf16>, vector<32x6xf32> -> vector<32x6xf32>
    %29 = arith.addf %23, %28 : vector<32x6xf32>
    %30 = vector.shape_cast %29 : vector<32x6xf32> to vector<2x16x6xf32>
    %c0_19 = arith.constant 0 : index
    %c0_20 = arith.constant 0 : index
    %31 = vector.load %arg4[%c0_19, %c0_20] : memref<16x6xf32, #tpu.memory_space<vmem>>, vector<16x6xf32>
    %32 = vector.shape_cast %31 : vector<16x6xf32> to vector<1x16x6xf32>
    %33 = vector.broadcast %32 : vector<1x16x6xf32> to vector<2x16x6xf32>
    %34 = arith.addf %30, %33 : vector<2x16x6xf32>
    %cst_21 = arith.constant dense<0xFF800000> : vector<2x6xf32>
    %35 = vector.multi_reduction <maximumf>, %34, %cst_21 [1] : vector<2x16x6xf32> to vector<2x6xf32>
    %c0_22 = arith.constant 0 : index
    %c0_23 = arith.constant 0 : index
    %36 = vector.load %arg5[%c0_22, %c0_23] : memref<1x6xf32, #tpu.memory_space<vmem>>, vector<1x6xf32>
    %37 = vector.broadcast %36 : vector<1x6xf32> to vector<2x6xf32>
    %38 = arith.addf %35, %37 : vector<2x6xf32>
    %c0_24 = arith.constant 0 : index
    %c0_25 = arith.constant 0 : index
    %39 = vector.load %arg6[%c0_24, %c0_25] : memref<6x128xf32, #tpu.memory_space<vmem>>, vector<6x128xf32>
    %cst_26 = arith.constant dense<0.000000e+00> : vector<2x128xf32>
    %40 = tpu.matmul %38, %39, %cst_26 {dimension_numbers = #tpu.dot_dimension_numbers<[1], [0], [0], [1], [0, 0, 1, 1], [], []>} : vector<2x6xf32>, vector<6x128xf32>, vector<2x128xf32> -> vector<2x128xf32>
    %c0_27 = arith.constant 0 : index
    %c0_28 = arith.constant 0 : index
    %41 = vector.load %arg7[%c0_27, %c0_28] : memref<1x128xf32, #tpu.memory_space<vmem>>, vector<1x128xf32>
    %42 = vector.broadcast %41 : vector<1x128xf32> to vector<2x128xf32>
    %43 = arith.addf %40, %42 : vector<2x128xf32>
    %cst_29 = arith.constant dense<0xFF800000> : vector<2xf32>
    %44 = vector.multi_reduction <maximumf>, %43, %cst_29 [1] : vector<2x128xf32> to vector<2xf32>
    %45 = vector.shape_cast %44 : vector<2xf32> to vector<2x1xf32>
    %46 = vector.broadcast %45 : vector<2x1xf32> to vector<2x128xf32>
    %47 = arith.subf %43, %46 : vector<2x128xf32>
    %48 = math.exp %47 : vector<2x128xf32>
    %cst_30 = arith.constant dense<0.000000e+00> : vector<2xf32>
    %49 = vector.multi_reduction <add>, %48, %cst_30 [1] : vector<2x128xf32> to vector<2xf32>
    %50 = vector.shape_cast %49 : vector<2xf32> to vector<2x1xf32>
    %51 = tpu.reciprocal %50 {approx = true} : vector<2x1xf32> -> vector<2x1xf32>
    %52 = vector.broadcast %51 : vector<2x1xf32> to vector<2x128xf32>
    %53 = arith.mulf %48, %52 : vector<2x128xf32>
    %c0_31 = arith.constant 0 : index
    %c0_32 = arith.constant 0 : index
    %54 = vector.load %arg8[%c0_31, %c0_32] : memref<2x128xf32, #tpu.memory_space<vmem>>, vector<2x128xf32>
    tpu.vector_store %arg8[%c0_31, %c0_32], %53 {strides = array<i32>} : memref<2x128xf32, #tpu.memory_space<vmem>>, vector<2x128xf32>,
    return
  }
  func.func @transform_0(%arg0: i32, %arg1: memref<32xi32, #tpu.memory_space<smem>>) -> (i32, i32) {
    %c0_i32 = arith.constant 0 : i32
    %c0_i32_0 = arith.constant 0 : i32
    %c0_i32_1 = arith.constant 0 : i32
    return %c0_i32, %c0_i32_0 : i32, i32
  }
  func.func @transform_1(%arg0: i32, %arg1: memref<32xi32, #tpu.memory_space<smem>>) -> (i32, i32, i32) {
    %c0_i32 = arith.constant 0 : i32
    %c0_i32_0 = arith.constant 0 : i32
    %c0_i32_1 = arith.constant 0 : i32
    %c0_i32_2 = arith.constant 0 : i32
    return %c0_i32, %c0_i32_0, %c0_i32_1 : i32, i32, i32
  }
  func.func @transform_2(%arg0: i32, %arg1: memref<32xi32, #tpu.memory_space<smem>>) -> (i32, i32) {
    %c0_i32 = arith.constant 0 : i32
    %c0_i32_0 = arith.constant 0 : i32
    %c0_i32_1 = arith.constant 0 : i32
    return %c0_i32, %c0_i32_0 : i32, i32
  }
  func.func @transform_3(%arg0: i32, %arg1: memref<32xi32, #tpu.memory_space<smem>>) -> (i32, i32) {
    %c0_i32 = arith.constant 0 : i32
    %c0_i32_0 = arith.constant 0 : i32
    %c0_i32_1 = arith.constant 0 : i32
    return %c0_i32, %c0_i32_0 : i32, i32
  }
  func.func @transform_4(%arg0: i32, %arg1: memref<32xi32, #tpu.memory_space<smem>>) -> (i32, i32) {
    %c0_i32 = arith.constant 0 : i32
    %c0_i32_0 = arith.constant 0 : i32
    %c0_i32_1 = arith.constant 0 : i32
    return %c0_i32, %c0_i32_0 : i32, i32
  }
  func.func @transform_5(%arg0: i32, %arg1: memref<32xi32, #tpu.memory_space<smem>>) -> (i32, i32) {
    %c0_i32 = arith.constant 0 : i32
    %c0_i32_0 = arith.constant 0 : i32
    %c0_i32_1 = arith.constant 0 : i32
    return %c0_i32, %c0_i32_0 : i32, i32
  }
  func.func @transform_6(%arg0: i32, %arg1: memref<32xi32, #tpu.memory_space<smem>>) -> (i32, i32) {
    %c0_i32 = arith.constant 0 : i32
    %c0_i32_0 = arith.constant 0 : i32
    return %arg0, %c0_i32 : i32, i32
  }
}

</mosaic_0001>

<llo_original>
// kernel: tpu_custom_call.1
$region0: #{tpu_custom_call.1}
  #allocation0 [shape = 'u32[]', space=smem, size = 0x4, offset = 0x4, fixed_abs, tag = 'smem constant byte address 0x4 - core index']
  #allocation1 [shape = 'u32[144,128]{1,0:T(1,128)}', space=vmem, size = 0x12000, scoped, tag = 'internal scratch']
  #allocation2 [shape = 'f32[40,32]{1,0:T(8,128)}', space=vmem, size = 0x5000, scoped, tag = 'scratch operand']
  #allocation3 [shape = 's32[1]{0}', space=sflag, size = 0x4, scoped, tag = 'scoped memory for tpu_custom_call.1']
  #allocation4 [shape = 'u8[512]{0}', space=smem, size = 0x200, scoped, tag = 'prefetched SMEM operand 0']
  %s0 = inlined_call_operand.vmem [shape: s32[32], index: 0, kind: input, shape index: {}]
  %s1 = inlined_call_operand.vmem [shape: f32[100,32], index: 1, kind: input, shape index: {}]
  %s2 = inlined_call_operand.vmem [shape: bf16[4,32,6], index: 2, kind: input, shape index: {}]
  %s3 = inlined_call_operand.vmem [shape: f32[16,6], index: 3, kind: input, shape index: {}]
  %s4 = inlined_call_operand.vmem [shape: f32[1,6], index: 4, kind: input, shape index: {}]
  %s5 = inlined_call_operand.vmem [shape: f32[6,128], index: 5, kind: input, shape index: {}]
  %s6 = inlined_call_operand.vmem [shape: f32[1,128], index: 6, kind: input, shape index: {}]
  %s7 = inlined_call_operand.hbm [shape: f32[2,128], index: 7, kind: output, shape index: {}]
  %s8 = sld [smem:[#allocation0]]
  $region41: #{tpu_custom_call.1} parent=0
    _
  %s10 = ssub.s32 1, %s8
  %s11 = scalar_select 0, %s10, %s8
  %s12 = sshll.u32 %s0, 4
  %s13 = int_to_ptr.vmem [resolvable:$true] %s12
  %15 = dma.vmem_to_smem %s13, 16, [#allocation4], [#allocation3]
  %16 = dma.done [#allocation3], 16
  %17 = sfence
  $region1: #{tpu_custom_call.1} parent=0
    #allocation5 [shape = 'u8[1024]{0}', space=vmem, size = 0x400, scoped, tag = 'output window, operand 0, single buffered']
    #allocation6 [shape = 's32[1]{0}', space=sflag, size = 0x4, scoped, tag = 'scoped memory for tpu_custom_call.1']
    %18 = vsyncpa [#allocation6], 0
    // Predicated region
    $region2: #{tpu_custom_call.1} parent=1 // pred_check
      _
    $region3: #{tpu_custom_call.1} parent=1 // pred_check_branch
      %20 = sbr.rel (0) target = $region5
    $region4: #{tpu_custom_call.1} parent=1 // pred_region
      _
    $region5: #{tpu_custom_call.1} parent=1 // pred_fallthru
      _
    // Predicated region
    $region6: #{tpu_custom_call.1} parent=1 // pred_check
      _
    $region7: #{tpu_custom_call.1} parent=1 // pred_check_branch
      %22 = sbr.rel (0) target = $region9
    $region8: #{tpu_custom_call.1} parent=1 // pred_region
      _
    $region9: #{tpu_custom_call.1} parent=1 // pred_fallthru
      _
    // Predicated region
    $region10: #{tpu_custom_call.1} parent=1 // pred_check
      _
    $region11: #{tpu_custom_call.1} parent=1 // pred_check_branch
      %24 = sbr.rel (0) target = $region13
    $region12: #{tpu_custom_call.1} parent=1 // pred_region
      _
    $region13: #{tpu_custom_call.1} parent=1 // pred_fallthru
      _
    // Predicated region
    $region14: #{tpu_custom_call.1} parent=1 // pred_check
      _
    $region15: #{tpu_custom_call.1} parent=1 // pred_check_branch
      %26 = sbr.rel (0) target = $region17
    $region16: #{tpu_custom_call.1} parent=1 // pred_region
      _
    $region17: #{tpu_custom_call.1} parent=1 // pred_fallthru
      _
    // Predicated region
    $region18: #{tpu_custom_call.1} parent=1 // pred_check
      _
    $region19: #{tpu_custom_call.1} parent=1 // pred_check_branch
      %28 = sbr.rel (0) target = $region21
    $region20: #{tpu_custom_call.1} parent=1 // pred_region
      _
    $region21: #{tpu_custom_call.1} parent=1 // pred_fallthru
      _
    // Predicated region
    $region22: #{tpu_custom_call.1} parent=1 // pred_check
      _
    $region23: #{tpu_custom_call.1} parent=1 // pred_check_branch
      %30 = sbr.rel (0) target = $region25
    $region24: #{tpu_custom_call.1} parent=1 // pred_region
      _
    $region25: #{tpu_custom_call.1} parent=1 // pred_fallthru
      _
    %vm32 = vcmask 261120
    %33 = vst.msk [vmem:[#allocation2] sm:$0xff] %vm32, 0.0
    %34 = vst.msk [vmem:[#allocation2 + $0x8] sm:$0xff] %vm32, 0.0
    %35 = vst.msk [vmem:[#allocation2 + $0x10] sm:$0xff] %vm32, 0.0
    %36 = vst.msk [vmem:[#allocation2 + $0x18] sm:$0xff] %vm32, 0.0
    %37 = vst.msk [vmem:[#allocation2 + $0x20] sm:$0xff] %vm32, 0.0
    %s38 = smul.u32 0, 32
    loop: start=0, step=1, limit=32
    $region26: #{tpu_custom_call.1} parent=1 // loop_pre_header
      _
    $region27: #{tpu_custom_call.1} parent=1 // loop_header
      %s40 = sphi 0, %s44
      %p41 = scmp.ge.s32.totalorder %s40, 32
    $region28: #{tpu_custom_call.1} parent=1 // loop_header_branch
      %43 = sbr.rel (%p41) target = $region32
    $region29: #{tpu_custom_call.1} parent=1 // loop_body
      %s45 = sadd.s32 %s38, %s40
      %s46 = sld [smem:[#allocation4 + %s45]]
      %p47 = scmp.gt.s32.totalorder %s46, 0
      %s48 = scalar_select %p47, %s46, 0
      %p49 = scmp.lt.s32.totalorder %s48, 99
      %s50 = scalar_select %p49, %s48, 99
      %s51 = scalar_lea.vmem %s1, %s50
      %v52 = vld [vmem:[%s51] sm:$0x1]
      %s53 = scalar_lea.vmem [#allocation2], %s40
      %vm54 = vcmask 253952
      %55 = vst.msk [vmem:[%s53] sm:$0x1] %vm54, %v52
    $region30: #{tpu_custom_call.1} parent=1 // loop_footer
      %s44 = sadd.s32 1, %s40
    $region31: #{tpu_custom_call.1} parent=1 // loop_footer_branch
      %39 = sbr.rel target = $region27
    $region32: #{tpu_custom_call.1} parent=1 // loop_exit
      _
    %v56 = vld [vmem:[#allocation2] sm:$0xff]
    %v57 = vld [vmem:[#allocation2 + $0x8] sm:$0xff]
    %v58 = vld [vmem:[#allocation2 + $0x10] sm:$0xff]
    %v59 = vld [vmem:[#allocation2 + $0x18] sm:$0xff]
    %v60 = vld [vmem:[#allocation2 + $0x20] sm:$0xff]
    %v61 = vpack.c.bf16 %v57, %v56
    %v62 = vpack.c.bf16 %v59, %v58
    %v63 = vld [vmem:[%s2] sm:$0xf]
    %v64 = vld [vmem:[%s2 + $0x4] sm:$0xf]
    %v65 = vld [vmem:[%s2 + $0x8] sm:$0xf]
    %v66 = vld [vmem:[%s2 + $0xc] sm:$0xf]
    %v67 = vpack.c.bf16 %v60, %v60
    %s68 = scalar_lea.vmem %s2, 16
    %v69 = vld [vmem:[%s68] sm:$0xf]
    %v70 = vld [vmem:[%s68 + $0x4] sm:$0xf]
    %v71 = vld [vmem:[%s68 + $0x8] sm:$0xf]
    %v72 = vld [vmem:[%s68 + $0xc] sm:$0xf]
    %vm73 = vsmask.f32 7424
    %v75 = vshrl.u32 %v61, 16
    %v77 = vshll.u32 %v61, 16
    %v79 = vrot.slane %v77, 1
    %v80 = vor.u32 %v75, %v79
    %v82 = vshll.u32 %v62, 16
    %v84 = vrot.slane %v82, 1
    %v85 = vsel %vm73, %v80, %v84
    %v86 = vshrl.u32 %v62, 16
    %v88 = vor.u32 %v86, %v84
    %v90 = vshll.u32 %v67, 16
    %v92 = vrot.slane %v90, 1
    %v93 = vsel %vm73, %v88, %v92
    %v98 = vunpack.c.l.b16 %v69
    %v99 = vunpack.c.l.b16 %v70
    %v100 = vunpack.c.l.b16 %v71
    %v101 = vunpack.c.l.b16 %v72
    %v102 = vpack.c.b16 %v99, %v98
    %v103 = vpack.c.b16 %v101, %v100
    %v107 = vsel %vm32, %v85, 0
    %v110 = vsel %vm32, %v93, 0
    %112 = vmatprep.subr.bf16.mxu0 0
    %113 = vmatpush1.bf16.msra.mxu0 %v102
    %114 = vmatprep.subr.bf16.mxu0 0
    %115 = vmatpush1.bf16.msra.mxu0 %v103
    %116 = vmatprep.subr.bf16.mxu0 0
    %117 = vmatpush1.bf16.msra.mxu0 0
    %118 = vmatprep.subr.bf16.mxu0 0
    %119 = vmatpush1.bf16.msra.mxu0 0
    %120 = vmatprep.subr.bf16.mxu0 0
    %121 = vmatpush1.bf16.msra.mxu0 0
    %122 = vmatprep.subr.bf16.mxu0 0
    %123 = vmatpush1.bf16.msra.mxu0 0
    %124 = vmatprep.subr.bf16.mxu0 0
    %125 = vmatpush1.bf16.msra.mxu0 0
    %126 = vmatprep.subr.bf16.mxu0 0
    %127 = vmatpush1.bf16.msra.mxu0 0
    %128 = vmatprep.subr.bf16.mxu0 0
    %129 = vmatpush1.bf16.msra.mxu0 0
    %130 = vmatprep.subr.bf16.mxu0 0
    %131 = vmatpush1.bf16.msra.mxu0 0
    %132 = vmatprep.subr.bf16.mxu0 0
    %133 = vmatpush1.bf16.msra.mxu0 0
    %134 = vmatprep.subr.bf16.mxu0 0
    %135 = vmatpush1.bf16.msra.mxu0 0
    %136 = vmatprep.subr.bf16.mxu0 0
    %137 = vmatpush1.bf16.msra.mxu0 0
    %138 = vmatprep.subr.bf16.mxu0 0
    %139 = vmatpush1.bf16.msra.mxu0 0
    %140 = vmatprep.subr.bf16.mxu0 0
    %141 = vmatpush1.bf16.msra.mxu0 0
    %142 = vmatprep.subr.bf16.mxu0 0
    %143 = vmatpush1.bf16.msra.mxu0 0
    %144 = vmatprep.mubr.bf16.mxu0 0
    %145 = vmatmul.mubr.bf16.gmra.mrb[0].mxu0 %v107
    %v146 = vpop.f32.mrb[0].mxu0
    %v147 = vadd.f32 0.0, %v146
    %v148 = vpop.f32.mrb[0].mxu0
    %v149 = vpop.f32.mrb[0].mxu0
    %v150 = vadd.f32 0.0, %v149
    %v151 = vpop.f32.mrb[0].mxu0
    %152 = vmatprep.mubr.bf16.mxu0 0
    %153 = vmatmul.mubr.bf16.gmra.mrb[0].mxu0 %v110
    %v154 = vpop.f32.mrb[0].mxu0
    %v155 = vadd.f32 0.0, %v154
    %v156 = vpop.f32.mrb[0].mxu0
    %v157 = vpop.f32.mrb[0].mxu0
    %v158 = vadd.f32 0.0, %v157
    %v159 = vpop.f32.mrb[0].mxu0
    %160 = vdwg.mxu0
    %v165 = vunpack.c.l.b16 %v63
    %v166 = vunpack.c.l.b16 %v64
    %v167 = vunpack.c.l.b16 %v65
    %v168 = vunpack.c.l.b16 %v66
    %v169 = vpack.c.b16 %v166, %v165
    %v170 = vpack.c.b16 %v168, %v167
    %v173 = vsel %vm32, %v61, 0
    %v175 = vsel %vm32, %v62, 0
    %177 = vmatprep.subr.bf16.mxu0 0
    %178 = vmatpush1.bf16.msra.mxu0 %v169
    %179 = vmatprep.subr.bf16.mxu0 0
    %180 = vmatpush1.bf16.msra.mxu0 %v170
    %181 = vmatprep.subr.bf16.mxu0 0
    %182 = vmatpush1.bf16.msra.mxu0 0
    %183 = vmatprep.subr.bf16.mxu0 0
    %184 = vmatpush1.bf16.msra.mxu0 0
    %185 = vmatprep.subr.bf16.mxu0 0
    %186 = vmatpush1.bf16.msra.mxu0 0
    %187 = vmatprep.subr.bf16.mxu0 0
    %188 = vmatpush1.bf16.msra.mxu0 0
    %189 = vmatprep.subr.bf16.mxu0 0
    %190 = vmatpush1.bf16.msra.mxu0 0
    %191 = vmatprep.subr.bf16.mxu0 0
    %192 = vmatpush1.bf16.msra.mxu0 0
    %193 = vmatprep.subr.bf16.mxu0 0
    %194 = vmatpush1.bf16.msra.mxu0 0
    %195 = vmatprep.subr.bf16.mxu0 0
    %196 = vmatpush1.bf16.msra.mxu0 0
    %197 = vmatprep.subr.bf16.mxu0 0
    %198 = vmatpush1.bf16.msra.mxu0 0
    %199 = vmatprep.subr.bf16.mxu0 0
    %200 = vmatpush1.bf16.msra.mxu0 0
    %201 = vmatprep.subr.bf16.mxu0 0
    %202 = vmatpush1.bf16.msra.mxu0 0
    %203 = vmatprep.subr.bf16.mxu0 0
    %204 = vmatpush1.bf16.msra.mxu0 0
    %205 = vmatprep.subr.bf16.mxu0 0
    %206 = vmatpush1.bf16.msra.mxu0 0
    %207 = vmatprep.subr.bf16.mxu0 0
    %208 = vmatpush1.bf16.msra.mxu0 0
    %209 = vmatprep.mubr.bf16.mxu0 0
    %210 = vmatmul.mubr.bf16.gmra.mrb[0].mxu0 %v173
    %v211 = vpop.f32.mrb[0].mxu0
    %v212 = vadd.f32 %v147, %v211
    %v213 = vpop.f32.mrb[0].mxu0
    %v214 = vpop.f32.mrb[0].mxu0
    %v215 = vadd.f32 %v150, %v214
    %v216 = vpop.f32.mrb[0].mxu0
    %217 = vmatprep.mubr.bf16.mxu0 0
    %218 = vmatmul.mubr.bf16.gmra.mrb[0].mxu0 %v175
    %v219 = vpop.f32.mrb[0].mxu0
    %v220 = vadd.f32 %v155, %v219
    %v221 = vpop.f32.mrb[0].mxu0
    %v222 = vpop.f32.mrb[0].mxu0
    %v223 = vadd.f32 %v158, %v222
    %v224 = vpop.f32.mrb[0].mxu0
    %225 = vdwg.mxu0
    %s226 = scalar_lea.vmem %s2, 32
    %v227 = vld [vmem:[%s226] sm:$0xf]
    %v228 = vld [vmem:[%s226 + $0x4] sm:$0xf]
    %v229 = vld [vmem:[%s226 + $0x8] sm:$0xf]
    %v230 = vld [vmem:[%s226 + $0xc] sm:$0xf]
    %vm234 = vcmask 1046528
    %v235 = vrot.slane %v61, 1
    %v236 = vrot.slane %v62, 1
    %v237 = vsel %vm234, %v235, %v236
    %v238 = vrot.slane %v67, 1
    %v239 = vsel %vm234, %v236, %v238
    %v244 = vunpack.c.l.b16 %v227
    %v245 = vunpack.c.l.b16 %v228
    %v246 = vunpack.c.l.b16 %v229
    %v247 = vunpack.c.l.b16 %v230
    %v248 = vpack.c.b16 %v245, %v244
    %v249 = vpack.c.b16 %v247, %v246
    %v253 = vsel %vm32, %v237, 0
    %v256 = vsel %vm32, %v239, 0
    %258 = vmatprep.subr.bf16.mxu0 0
    %259 = vmatpush1.bf16.msra.mxu0 %v248
    %260 = vmatprep.subr.bf16.mxu0 0
    %261 = vmatpush1.bf16.msra.mxu0 %v249
    %262 = vmatprep.subr.bf16.mxu0 0
    %263 = vmatpush1.bf16.msra.mxu0 0
    %264 = vmatprep.subr.bf16.mxu0 0
    %265 = vmatpush1.bf16.msra.mxu0 0
    %266 = vmatprep.subr.bf16.mxu0 0
    %267 = vmatpush1.bf16.msra.mxu0 0
    %268 = vmatprep.subr.bf16.mxu0 0
    %269 = vmatpush1.bf16.msra.mxu0 0
    %270 = vmatprep.subr.bf16.mxu0 0
    %271 = vmatpush1.bf16.msra.mxu0 0
    %272 = vmatprep.subr.bf16.mxu0 0
    %273 = vmatpush1.bf16.msra.mxu0 0
    %274 = vmatprep.subr.bf16.mxu0 0
    %275 = vmatpush1.bf16.msra.mxu0 0
    %276 = vmatprep.subr.bf16.mxu0 0
    %277 = vmatpush1.bf16.msra.mxu0 0
    %278 = vmatprep.subr.bf16.mxu0 0
    %279 = vmatpush1.bf16.msra.mxu0 0
    %280 = vmatprep.subr.bf16.mxu0 0
    %281 = vmatpush1.bf16.msra.mxu0 0
    %282 = vmatprep.subr.bf16.mxu0 0
    %283 = vmatpush1.bf16.msra.mxu0 0
    %284 = vmatprep.subr.bf16.mxu0 0
    %285 = vmatpush1.bf16.msra.mxu0 0
    %286 = vmatprep.subr.bf16.mxu0 0
    %287 = vmatpush1.bf16.msra.mxu0 0
    %288 = vmatprep.subr.bf16.mxu0 0
    %289 = vmatpush1.bf16.msra.mxu0 0
    %290 = vmatprep.mubr.bf16.mxu0 0
    %291 = vmatmul.mubr.bf16.gmra.mrb[0].mxu0 %v253
    %v292 = vpop.f32.mrb[0].mxu0
    %v293 = vadd.f32 0.0, %v292
    %v294 = vpop.f32.mrb[0].mxu0
    %v295 = vpop.f32.mrb[0].mxu0
    %v296 = vadd.f32 0.0, %v295
    %v297 = vpop.f32.mrb[0].mxu0
    %298 = vmatprep.mubr.bf16.mxu0 0
    %299 = vmatmul.mubr.bf16.gmra.mrb[0].mxu0 %v256
    %v300 = vpop.f32.mrb[0].mxu0
    %v301 = vadd.f32 0.0, %v300
    %v302 = vpop.f32.mrb[0].mxu0
    %v303 = vpop.f32.mrb[0].mxu0
    %v304 = vadd.f32 0.0, %v303
    %v305 = vpop.f32.mrb[0].mxu0
    %306 = vdwg.mxu0
    %v307 = vadd.f32 %v212, %v293
    %v308 = vadd.f32 %v215, %v296
    %v309 = vadd.f32 %v220, %v301
    %v310 = vadd.f32 %v223, %v304
    %s311 = scalar_lea.vmem %s2, 48
    %v312 = vld [vmem:[%s311] sm:$0xf]
    %v313 = vld [vmem:[%s311 + $0x4] sm:$0xf]
    %v314 = vld [vmem:[%s311 + $0x8] sm:$0xf]
    %v315 = vld [vmem:[%s311 + $0xc] sm:$0xf]
    %vm316 = vsmask.f32 6400
    %v317 = vrot.slane %v75, 1
    %v318 = vrot.slane %v77, 2
    %v319 = vor.u32 %v317, %v318
    %v320 = vrot.slane %v86, 1
    %v321 = vrot.slane %v82, 2
    %v322 = vor.u32 %v320, %v321
    %v323 = vsel %vm316, %v319, %v322
    %v324 = vshrl.u32 %v67, 16
    %v326 = vrot.slane %v324, 1
    %v327 = vrot.slane %v90, 2
    %v328 = vor.u32 %v326, %v327
    %v329 = vsel %vm316, %v322, %v328
    %v334 = vunpack.c.l.b16 %v312
    %v335 = vunpack.c.l.b16 %v313
    %v336 = vunpack.c.l.b16 %v314
    %v337 = vunpack.c.l.b16 %v315
    %v338 = vpack.c.b16 %v335, %v334
    %v339 = vpack.c.b16 %v337, %v336
    %v343 = vsel %vm32, %v323, 0
    %v346 = vsel %vm32, %v329, 0
    %348 = vmatprep.subr.bf16.mxu0 0
    %349 = vmatpush1.bf16.msra.mxu0 %v338
    %350 = vmatprep.subr.bf16.mxu0 0
    %351 = vmatpush1.bf16.msra.mxu0 %v339
    %352 = vmatprep.subr.bf16.mxu0 0
    %353 = vmatpush1.bf16.msra.mxu0 0
    %354 = vmatprep.subr.bf16.mxu0 0
    %355 = vmatpush1.bf16.msra.mxu0 0
    %356 = vmatprep.subr.bf16.mxu0 0
    %357 = vmatpush1.bf16.msra.mxu0 0
    %358 = vmatprep.subr.bf16.mxu0 0
    %359 = vmatpush1.bf16.msra.mxu0 0
    %360 = vmatprep.subr.bf16.mxu0 0
    %361 = vmatpush1.bf16.msra.mxu0 0
    %362 = vmatprep.subr.bf16.mxu0 0
    %363 = vmatpush1.bf16.msra.mxu0 0
    %364 = vmatprep.subr.bf16.mxu0 0
    %365 = vmatpush1.bf16.msra.mxu0 0
    %366 = vmatprep.subr.bf16.mxu0 0
    %367 = vmatpush1.bf16.msra.mxu0 0
    %368 = vmatprep.subr.bf16.mxu0 0
    %369 = vmatpush1.bf16.msra.mxu0 0
    %370 = vmatprep.subr.bf16.mxu0 0
    %371 = vmatpush1.bf16.msra.mxu0 0
    %372 = vmatprep.subr.bf16.mxu0 0
    %373 = vmatpush1.bf16.msra.mxu0 0
    %374 = vmatprep.subr.bf16.mxu0 0
    %375 = vmatpush1.bf16.msra.mxu0 0
    %376 = vmatprep.subr.bf16.mxu0 0
    %377 = vmatpush1.bf16.msra.mxu0 0
    %378 = vmatprep.subr.bf16.mxu0 0
    %379 = vmatpush1.bf16.msra.mxu0 0
    %380 = vmatprep.mubr.bf16.mxu0 0
    %381 = vmatmul.mubr.bf16.gmra.mrb[0].mxu0 %v343
    %v382 = vpop.f32.mrb[0].mxu0
    %v383 = vadd.f32 0.0, %v382
    %v384 = vpop.f32.mrb[0].mxu0
    %v385 = vpop.f32.mrb[0].mxu0
    %v386 = vadd.f32 0.0, %v385
    %v387 = vpop.f32.mrb[0].mxu0
    %388 = vmatprep.mubr.bf16.mxu0 0
    %389 = vmatmul.mubr.bf16.gmra.mrb[0].mxu0 %v346
    %v390 = vpop.f32.mrb[0].mxu0
    %v391 = vadd.f32 0.0, %v390
    %v392 = vpop.f32.mrb[0].mxu0
    %v393 = vpop.f32.mrb[0].mxu0
    %v394 = vadd.f32 0.0, %v393
    %v395 = vpop.f32.mrb[0].mxu0
    %396 = vdwg.mxu0
    %v397 = vadd.f32 %v307, %v383
    %v398 = vadd.f32 %v308, %v386
    %v399 = vadd.f32 %v309, %v391
    %v400 = vadd.f32 %v310, %v394
    %v401 = vld [vmem:[%s3] sm:$0xff]
    %v402 = vld [vmem:[%s3 + $0x8] sm:$0xff]
    %v403 = vadd.f32 %v397, %v401
    %v404 = vadd.f32 %v398, %v402
    %v405 = vadd.f32 %v399, %v401
    %v406 = vadd.f32 %v400, %v402
    %vm407 = vcmask 48128
    %v408 = vsel %vm407, %v403, -inf
    %v409 = vsel %vm407, %v404, -inf
    %v410 = vmax.f32 %v408, %v409
    %v411 = vrot.slane %v410, 4
    %v412 = vmax.f32 %v410, %v411
    %v413 = vrot.slane %v412, 2
    %v414 = vmax.f32 %v412, %v413
    %v415 = vrot.slane %v414, 1
    %v416 = vmax.f32 %v414, %v415
    %v417 = vsel %vm407, %v405, -inf
    %v418 = vsel %vm407, %v406, -inf
    %v419 = vmax.f32 %v417, %v418
    %v420 = vrot.slane %v419, 4
    %v421 = vmax.f32 %v419, %v420
    %v422 = vrot.slane %v421, 2
    %v423 = vmax.f32 %v421, %v422
    %v424 = vrot.slane %v423, 1
    %v425 = vmax.f32 %v423, %v424
    %v426 = vld [vmem:[%s4] sm:$0x1]
    %v428 = vlaneseq
    %v429 = vshrl.u32 %v428, 7
    %v430 = vsub.s32 0, %v429
    %v431 = vrot.slane %v426, %v430
    %v433 = vadd.f32 %v416, %v431
    %v434 = vadd.f32 %v425, %v431
    %v435 = vld [vmem:[%s5] sm:$0x3f]
    %v436 = vld [vmem:[%s6] sm:$0x1]
    %v438 = vlaneseq
    %v439 = vshrl.u32 %v438, 7
    %v440 = vsub.s32 0, %v439
    %v441 = vrot.slane %v436, %v440
    %v445 = vrot.slane %v434, 7
    %vm446 = vcmask 1041409
    %v447 = vsel %vm446, %v445, %v433
    %v448 = vsel %vm407, %v447, 0
    %vm450 = vcmask 1045504
    %v452 = vsel %vm450, %v435, 0
    %454 = vmatprep.subr.mxu0 0.0
    %455 = vmatpush1.msra.mxu0 %v452
    %456 = vmatprep.subr.mxu0 0.0
    %457 = vmatpush1.msra.mxu0 0.0
    %458 = vmatprep.subr.mxu0 0.0
    %459 = vmatpush1.msra.mxu0 0.0
    %460 = vmatprep.subr.mxu0 0.0
    %461 = vmatpush1.msra.mxu0 0.0
    %462 = vmatprep.subr.mxu0 0.0
    %463 = vmatpush1.msra.mxu0 0.0
    %464 = vmatprep.subr.mxu0 0.0
    %465 = vmatpush1.msra.mxu0 0.0
    %466 = vmatprep.subr.mxu0 0.0
    %467 = vmatpush1.msra.mxu0 0.0
    %468 = vmatprep.subr.mxu0 0.0
    %469 = vmatpush1.msra.mxu0 0.0
    %470 = vmatprep.subr.mxu0 0.0
    %471 = vmatpush1.msra.mxu0 0.0
    %472 = vmatprep.subr.mxu0 0.0
    %473 = vmatpush1.msra.mxu0 0.0
    %474 = vmatprep.subr.mxu0 0.0
    %475 = vmatpush1.msra.mxu0 0.0
    %476 = vmatprep.subr.mxu0 0.0
    %477 = vmatpush1.msra.mxu0 0.0
    %478 = vmatprep.subr.mxu0 0.0
    %479 = vmatpush1.msra.mxu0 0.0
    %480 = vmatprep.subr.mxu0 0.0
    %481 = vmatpush1.msra.mxu0 0.0
    %482 = vmatprep.subr.mxu0 0.0
    %483 = vmatpush1.msra.mxu0 0.0
    %484 = vmatprep.subr.mxu0 0.0
    %485 = vmatpush1.msra.mxu0 0.0
    %486 = vmatprep.subr.mxu0 0.0
    %487 = vmatpush1.msra.mxu0 0.0
    %488 = vmatprep.subr.mxu0 0.0
    %489 = vmatpush1.msra.mxu0 0.0
    %490 = vmatprep.subr.mxu0 0.0
    %491 = vmatpush1.msra.mxu0 0.0
    %492 = vmatprep.subr.mxu0 0.0
    %493 = vmatpush1.msra.mxu0 0.0
    %494 = vmatprep.subr.mxu0 0.0
    %495 = vmatpush1.msra.mxu0 0.0
    %496 = vmatprep.subr.mxu0 0.0
    %497 = vmatpush1.msra.mxu0 0.0
    %498 = vmatprep.subr.mxu0 0.0
    %499 = vmatpush1.msra.mxu0 0.0
    %500 = vmatprep.subr.mxu0 0.0
    %501 = vmatpush1.msra.mxu0 0.0
    %502 = vmatprep.subr.mxu0 0.0
    %503 = vmatpush1.msra.mxu0 0.0
    %504 = vmatprep.subr.mxu0 0.0
    %505 = vmatpush1.msra.mxu0 0.0
    %506 = vmatprep.subr.mxu0 0.0
    %507 = vmatpush1.msra.mxu0 0.0
    %508 = vmatprep.subr.mxu0 0.0
    %509 = vmatpush1.msra.mxu0 0.0
    %510 = vmatprep.subr.mxu0 0.0
    %511 = vmatpush1.msra.mxu0 0.0
    %512 = vmatprep.subr.mxu0 0.0
    %513 = vmatpush1.msra.mxu0 0.0
    %514 = vmatprep.subr.mxu0 0.0
    %515 = vmatpush1.msra.mxu0 0.0
    %516 = vmatprep.subr.mxu0 0.0
    %517 = vmatpush1.msra.mxu0 0.0
    %518 = vmatprep.mubr.f32.mxu0 0.0
    %519 = vmatmul.mubr.f32.gmra.mrb[0].mxu0 %v448
    %v520 = vpop.f32.mrb[0].mxu0
    %v521 = vadd.f32 %v441, %v520
    %v522 = vpop.f32.mrb[0].mxu0
    %523 = vdwg.mxu0
    %vm524 = vcmask 1041408
    %v525 = vsel %vm524, %v521, -inf
    %526 = vmax.xlane.f32.xlu0 %v525
    %v527 = vpop.xlane.xlu0 %526
    %v528 = vsub.f32 %v521, %v527
    %v529 = vmul.f32 %v528, 1.442695
    %v530 = vpow.pop %v529
    %v531 = vsel %vm524, %v530, 0.0
    %532 = vadd.xlane.f32.xlu0 %v531
    %v533 = vpop.xlane.xlu0 %532
    %v534 = vrcp.pop %v533
    %v535 = vmul.f32 %v530, %v534
    %536 = vst [vmem:[#allocation5] sm:$0x3] %v535
    // Predicated region
    $region33: #{tpu_custom_call.1} parent=1 // pred_check
      _
    $region34: #{tpu_custom_call.1} parent=1 // pred_check_branch
      %538 = sbr.rel (0) target = $region36
    $region35: #{tpu_custom_call.1} parent=1 // pred_region
      %s540 = ssub.s32 32, 32
      %541 = vsyncadd [#allocation6], %s540
      %s543 = sshll.u32 [#allocation5], 4
      %s544 = int_to_ptr.vmem [resolvable:$true] %s543
      %546 = dma.vmem_to_hbm [thread:$0]  %s544, 32, %s7, [#allocation6]
    $region36: #{tpu_custom_call.1} parent=1 // pred_fallthru
      _
    // Predicated region
    $region37: #{tpu_custom_call.1} parent=1 // pred_check
      _
    $region38: #{tpu_custom_call.1} parent=1 // pred_check_branch
      %548 = sbr.rel (0) target = $region40
    $region39: #{tpu_custom_call.1} parent=1 // pred_region
      %549 = dma.done [#allocation6], 32
    $region40: #{tpu_custom_call.1} parent=1 // pred_fallthru
      _
    %550 = vsyncpa [#allocation6], 1

</llo_original>
